<compile_context>
chip_gen: v7x
topology: tpu7x:2x2x1
jax: 0.10.0
libtpu: 0.0.40
codegen_flags: <defaults>
</compile_context>

<pallas_src>
import functools

import jax
import jax.numpy as jnp
from jax.experimental import pallas as pl
from jax.experimental.pallas import tpu as pltpu


def _round_up(x, m):
    return (x + m - 1) // m * m


def _layer_kernel(a_ref, xk_ref, xi_ref, dinv_ref, wr_ref, wa_ref, b_ref,
                  o_ref, acc_ref):
    """One SimpleConv(mean, cat-root) + Linear + ReLU layer (row tile x K tile)."""
    k = pl.program_id(1)

    @pl.when(k == 0)
    def _():
        acc_ref[...] = jnp.zeros_like(acc_ref)

    # Partial weighted-sum aggregation: acc += A_raw[row_tile, k_tile] @ X[k_tile, :]
    acc_ref[...] += jnp.dot(a_ref[...], xk_ref[...],
                            preferred_element_type=jnp.float32)

    @pl.when(k == pl.num_programs(1) - 1)
    def _():
        # Finalize once per row tile (hoisted out of the K loop):
        #   mean-normalize, then the cat-Linear split into root/agg halves.
        agg = acc_ref[...] * dinv_ref[...]                               # [tm, F]
        h = jnp.dot(xi_ref[...], wr_ref[...],
                    preferred_element_type=jnp.float32)                  # root half
        h = h + jnp.dot(agg, wa_ref[...],
                        preferred_element_type=jnp.float32)              # agg half
        h = h + b_ref[...]
        o_ref[...] = jnp.maximum(h, 0.0)


def _layer_call(adj, x_pad, dinv, w_root, w_agg, b_pad, *, tm, tk):
    n_pad, f_pad = x_pad.shape
    grid = (n_pad // tm, n_pad // tk)
    return pl.pallas_call(
        _layer_kernel,
        out_shape=jax.ShapeDtypeStruct((n_pad, f_pad), jnp.float32),
        grid_spec=pltpu.PrefetchScalarGridSpec(
            num_scalar_prefetch=0,
            grid=grid,
            in_specs=[
                pl.BlockSpec((tm, tk), lambda i, k: (i, k)),            # A_raw tile
                pl.BlockSpec((tk, f_pad), lambda i, k: (k, 0)),         # X rows aggregated
                pl.BlockSpec((tm, f_pad), lambda i, k: (i, 0)),         # root rows (cat)
                pl.BlockSpec((tm, 1), lambda i, k: (i, 0)),             # 1/indegree
                pl.BlockSpec((f_pad, f_pad), lambda i, k: (0, 0)),      # W_root (resident)
                pl.BlockSpec((f_pad, f_pad), lambda i, k: (0, 0)),      # W_agg (resident)
                pl.BlockSpec((1, f_pad), lambda i, k: (0, 0)),          # bias (resident)
            ],
            out_specs=pl.BlockSpec((tm, f_pad), lambda i, k: (i, 0)),
            scratch_shapes=[pltpu.VMEM((tm, f_pad), jnp.float32)],
        ),
        compiler_params=pltpu.CompilerParams(
            dimension_semantics=("parallel", "arbitrary"),
            vmem_limit_bytes=64 * 1024 * 1024,
        ),
    )(adj, x_pad, x_pad, dinv, w_root, w_agg, b_pad)


@functools.partial(jax.jit, static_argnames=("row_block", "k_block"))
def gnn_forward(data, edge, att, w1, b1, w2, b2, *, row_block=256, k_block=512):
    """data: [N, F] f32 node features; edge: [2, E] int (src, dst); att: [E] f32.
       w1, w2: [F, 2F] Linear weights (PyTorch y = x @ W.T + b); b1, b2: [F]."""
    N, F = data.shape
    f_pad = _round_up(F, 128)
    n_pad = _round_up(N, 128)

    def _pick_tile(req):
        # Largest multiple of 128 that is <= requested and divides n_pad.
        t = min(_round_up(req, 128), n_pad)
        while n_pad % t:
            t -= 128
        return t

    tm = _pick_tile(row_block)
    tk = _pick_tile(k_block)

    src = edge[0].astype(jnp.int32)
    dst = edge[1].astype(jnp.int32)
    att_f = att.astype(jnp.float32)

    # Dense UNNORMALIZED aggregation operator at the padded size (padded rows /
    # cols are zero, so no in-kernel masking is needed).  The mean normalization
    # (1/indegree) is applied inside the kernel, saving a full N^2 elementwise
    # HBM pass over the adjacency.
    # NOTE: if the graph (edge, att) is static across calls, hoist/cache adj & dinv.
    # TODO(synk): replace dense A@X with a CSR gather / segment-sum Pallas
    # aggregation (scalar-prefetched row pointers) for realistic graphs with E << N^2.
    adj = jnp.zeros((n_pad, n_pad), jnp.float32).at[dst, src].add(att_f)
    deg = jnp.zeros((n_pad,), jnp.float32).at[dst].add(1.0)
    dinv = (1.0 / jnp.maximum(deg, 1.0))[:, None]                       # [n_pad, 1]

    x_pad = jnp.zeros((n_pad, f_pad), jnp.float32).at[:N, :F].set(
        data.astype(jnp.float32))

    def pad_params(w, b):
        wt = w.astype(jnp.float32).T                                    # [2F, F]
        w_root = jnp.zeros((f_pad, f_pad), jnp.float32).at[:F, :F].set(wt[:F])
        w_agg = jnp.zeros((f_pad, f_pad), jnp.float32).at[:F, :F].set(wt[F:])
        bp = jnp.zeros((1, f_pad), jnp.float32).at[0, :F].set(b.astype(jnp.float32))
        return w_root, w_agg, bp

    w1r, w1a, b1p = pad_params(w1, b1)
    w2r, w2a, b2p = pad_params(w2, b2)

    h1 = _layer_call(adj, x_pad, dinv, w1r, w1a, b1p, tm=tm, tk=tk)
    h2 = _layer_call(adj, h1, dinv, w2r, w2a, b2p, tm=tm, tk=tk)
    return h2[:N, :F]


def _reference(data, edge, att, w1, b1, w2, b2):
    """Pure-JAX reference matching PyG SimpleConv(aggr='mean', combine_root='cat')."""
    N, F = data.shape
    src, dst = edge[0], edge[1]

    def simple_conv(x):
        msg = att[:, None] * x[src]                                     # [E, F]
        summed = jnp.zeros((N, F), jnp.float32).at[dst].add(msg)
        cnt = jnp.zeros((N,), jnp.float32).at[dst].add(1.0)
        agg = summed / jnp.maximum(cnt, 1.0)[:, None]
        return jnp.concatenate([x, agg], axis=-1)                       # [N, 2F]

    h = jnp.maximum(simple_conv(data) @ w1.T + b1, 0.0)
    h = jnp.maximum(simple_conv(h) @ w2.T + b2, 0.0)
    return h


if __name__ == "__main__":
    key = jax.random.PRNGKey(0)
    N, F, E = 16, 32, 48  # nodes, feats_hidden, edges

    k_x, k_e, k_a, k_w1, k_b1, k_w2, k_b2 = jax.random.split(key, 7)
    data = jax.random.normal(k_x, (N, F), dtype=jnp.float32)
    edge = jax.random.randint(k_e, (2, E), 0, N, dtype=jnp.int32)
    att = jax.random.uniform(k_a, (E,), dtype=jnp.float32)

    # Deterministic parameter init (nn.Linear(feats_hidden*2, feats_hidden) x2).
    bound = 1.0 / jnp.sqrt(2.0 * F)
    w1 = jax.random.uniform(k_w1, (F, 2 * F), jnp.float32, -bound, bound)
    b1 = jax.random.uniform(k_b1, (F,), jnp.float32, -bound, bound)
    w2 = jax.random.uniform(k_w2, (F, 2 * F), jnp.float32, -bound, bound)
    b2 = jax.random.uniform(k_b2, (F,), jnp.float32, -bound, bound)

    out = gnn_forward(data, edge, att, w1, b1, w2, b2)
    out = jax.block_until_ready(out)

    ref = _reference(data, edge, att, w1, b1, w2, b2)
    assert out.shape == (N, F)
    assert jnp.allclose(out, ref, atol=1e-4, rtol=1e-4), "mismatch vs reference"

    print("KERNEL_OK")
</pallas_src>

<mosaic_0001>
module attributes {stable_mosaic.version = 11 : i64} {
  func.func private @main(%arg0: i32) attributes {dimension_semantics = [#tpu.dimension_semantics<core_parallel>], iteration_bounds = array<i64: 2>, tpu.core_type = #tpu.core_type<sc_scalar_subcore>, window_params = []} {
    return
  }
}

module attributes {stable_mosaic.version = 11 : i64} {
  func.func private @main(%arg0: i32) attributes {dimension_semantics = [#tpu.dimension_semantics<core_parallel>], iteration_bounds = array<i64: 2>, tpu.core_type = #tpu.core_type<sc_scalar_subcore>, window_params = []} {
    return
  }
}

module attributes {stable_mosaic.version = 11 : i64} {
  func.func @_layer_kernel(%arg0: i32, %arg1: i32, %arg2: memref<128x128xf32, #tpu.memory_space<vmem>>, %arg3: memref<128x128xf32, #tpu.memory_space<vmem>>, %arg4: memref<128x128xf32, #tpu.memory_space<vmem>>, %arg5: memref<128x1xf32, #tpu.memory_space<vmem>>, %arg6: memref<128x128xf32, #tpu.memory_space<vmem>>, %arg7: memref<128x128xf32, #tpu.memory_space<vmem>>, %arg8: memref<1x128xf32, #tpu.memory_space<vmem>>, %arg9: memref<128x128xf32, #tpu.memory_space<vmem>>, %arg10: memref<128x128xf32, #tpu.memory_space<vmem>>) attributes {dimension_semantics = [#tpu.dimension_semantics<parallel>, #tpu.dimension_semantics<arbitrary>], iteration_bounds = array<i64: 1, 1>, scalar_prefetch = 0 : i64, scratch_operands = 1 : i64, tpu.core_type = #tpu.core_type<tc>, window_params = [{transform_indices = @transform_0, window_bounds = array<i64: 128, 128>}, {transform_indices = @transform_1, window_bounds = array<i64: 128, 128>}, {transform_indices = @transform_2, window_bounds = array<i64: 128, 128>}, {transform_indices = @transform_3, window_bounds = array<i64: 128, 1>}, {pipeline_mode = #tpu.pipeline_mode<synchronous>, transform_indices = @transform_4, window_bounds = array<i64: 128, 128>}, {pipeline_mode = #tpu.pipeline_mode<synchronous>, transform_indices = @transform_5, window_bounds = array<i64: 128, 128>}, {pipeline_mode = #tpu.pipeline_mode<synchronous>, transform_indices = @transform_6, window_bounds = array<i64: 1, 128>}, {transform_indices = @transform_7, window_bounds = array<i64: 128, 128>}]} {
    %c0_i32 = arith.constant 0 : i32
    %0 = arith.cmpi eq, %arg1, %c0_i32 : i32
    %1 = arith.extui %0 : i1 to i32
    %c0_i32_0 = arith.constant 0 : i32
    %2 = arith.cmpi ne, %1, %c0_i32_0 : i32
    scf.if %2 {
      %cst_10 = arith.constant 0.000000e+00 : f32
      %12 = vector.broadcast %cst_10 : f32 to vector<128x128xf32>
      %c0_11 = arith.constant 0 : index
      %c0_12 = arith.constant 0 : index
      %13 = vector.load %arg10[%c0_11, %c0_12] : memref<128x128xf32, #tpu.memory_space<vmem>>, vector<128x128xf32>
      tpu.vector_store %arg10[%c0_11, %c0_12], %12 {strides = array<i32>} : memref<128x128xf32, #tpu.memory_space<vmem>>, vector<128x128xf32>,
    } else {
    }
    %c0 = arith.constant 0 : index
    %c0_1 = arith.constant 0 : index
    %3 = vector.load %arg10[%c0, %c0_1] : memref<128x128xf32, #tpu.memory_space<vmem>>, vector<128x128xf32>
    %c0_2 = arith.constant 0 : index
    %c0_3 = arith.constant 0 : index
    %4 = vector.load %arg2[%c0_2, %c0_3] : memref<128x128xf32, #tpu.memory_space<vmem>>, vector<128x128xf32>
    %c0_4 = arith.constant 0 : index
    %c0_5 = arith.constant 0 : index
    %5 = vector.load %arg3[%c0_4, %c0_5] : memref<128x128xf32, #tpu.memory_space<vmem>>, vector<128x128xf32>
    %cst = arith.constant dense<0.000000e+00> : vector<128x128xf32>
    %6 = tpu.matmul %4, %5, %cst {dimension_numbers = #tpu.dot_dimension_numbers<[1], [0], [0], [1], [0, 0, 1, 1], [], []>} : vector<128x128xf32>, vector<128x128xf32>, vector<128x128xf32> -> vector<128x128xf32>
    %7 = arith.addf %3, %6 : vector<128x128xf32>
    %c0_6 = arith.constant 0 : index
    %c0_7 = arith.constant 0 : index
    %8 = vector.load %arg10[%c0_6, %c0_7] : memref<128x128xf32, #tpu.memory_space<vmem>>, vector<128x128xf32>
    tpu.vector_store %arg10[%c0_6, %c0_7], %7 {strides = array<i32>} : memref<128x128xf32, #tpu.memory_space<vmem>>, vector<128x128xf32>,
    %c0_i32_8 = arith.constant 0 : i32
    %9 = arith.cmpi eq, %arg1, %c0_i32_8 : i32
    %10 = arith.extui %9 : i1 to i32
    %c0_i32_9 = arith.constant 0 : i32
    %11 = arith.cmpi ne, %10, %c0_i32_9 : i32
    scf.if %11 {
      %c0_10 = arith.constant 0 : index
      %c0_11 = arith.constant 0 : index
      %12 = vector.load %arg10[%c0_10, %c0_11] : memref<128x128xf32, #tpu.memory_space<vmem>>, vector<128x128xf32>
      %c0_12 = arith.constant 0 : index
      %c0_13 = arith.constant 0 : index
      %13 = vector.load %arg5[%c0_12, %c0_13] : memref<128x1xf32, #tpu.memory_space<vmem>>, vector<128x1xf32>
      %14 = vector.broadcast %13 : vector<128x1xf32> to vector<128x128xf32>
      %15 = arith.mulf %12, %14 : vector<128x128xf32>
      %c0_14 = arith.constant 0 : index
      %c0_15 = arith.constant 0 : index
      %16 = vector.load %arg4[%c0_14, %c0_15] : memref<128x128xf32, #tpu.memory_space<vmem>>, vector<128x128xf32>
      %c0_16 = arith.constant 0 : index
      %c0_17 = arith.constant 0 : index
      %17 = vector.load %arg6[%c0_16, %c0_17] : memref<128x128xf32, #tpu.memory_space<vmem>>, vector<128x128xf32>
      %cst_18 = arith.constant dense<0.000000e+00> : vector<128x128xf32>
      %18 = tpu.matmul %16, %17, %cst_18 {dimension_numbers = #tpu.dot_dimension_numbers<[1], [0], [0], [1], [0, 0, 1, 1], [], []>} : vector<128x128xf32>, vector<128x128xf32>, vector<128x128xf32> -> vector<128x128xf32>
      %c0_19 = arith.constant 0 : index
      %c0_20 = arith.constant 0 : index
      %19 = vector.load %arg7[%c0_19, %c0_20] : memref<128x128xf32, #tpu.memory_space<vmem>>, vector<128x128xf32>
      %cst_21 = arith.constant dense<0.000000e+00> : vector<128x128xf32>
      %20 = tpu.matmul %15, %19, %cst_21 {dimension_numbers = #tpu.dot_dimension_numbers<[1], [0], [0], [1], [0, 0, 1, 1], [], []>} : vector<128x128xf32>, vector<128x128xf32>, vector<128x128xf32> -> vector<128x128xf32>
      %21 = arith.addf %18, %20 : vector<128x128xf32>
      %c0_22 = arith.constant 0 : index
      %c0_23 = arith.constant 0 : index
      %22 = vector.load %arg8[%c0_22, %c0_23] : memref<1x128xf32, #tpu.memory_space<vmem>>, vector<1x128xf32>
      %23 = vector.broadcast %22 : vector<1x128xf32> to vector<128x128xf32>
      %24 = arith.addf %21, %23 : vector<128x128xf32>
      %cst_24 = arith.constant 0.000000e+00 : f32
      %25 = vector.broadcast %cst_24 : f32 to vector<128x128xf32>
      %26 = arith.maximumf %24, %25 : vector<128x128xf32>
      %c0_25 = arith.constant 0 : index
      %c0_26 = arith.constant 0 : index
      %27 = vector.load %arg9[%c0_25, %c0_26] : memref<128x128xf32, #tpu.memory_space<vmem>>, vector<128x128xf32>
      tpu.vector_store %arg9[%c0_25, %c0_26], %26 {strides = array<i32>} : memref<128x128xf32, #tpu.memory_space<vmem>>, vector<128x128xf32>,
    } else {
    }
    return
  }
  func.func @transform_0(%arg0: i32, %arg1: i32) -> (i32, i32) {
    %c0_i32 = arith.constant 0 : i32
    return %arg0, %arg1 : i32, i32
  }
  func.func @transform_1(%arg0: i32, %arg1: i32) -> (i32, i32) {
    %c0_i32 = arith.constant 0 : i32
    %c0_i32_0 = arith.constant 0 : i32
    return %arg1, %c0_i32 : i32, i32
  }
  func.func @transform_2(%arg0: i32, %arg1: i32) -> (i32, i32) {
    %c0_i32 = arith.constant 0 : i32
    %c0_i32_0 = arith.constant 0 : i32
    return %arg0, %c0_i32 : i32, i32
  }
  func.func @transform_3(%arg0: i32, %arg1: i32) -> (i32, i32) {
    %c0_i32 = arith.constant 0 : i32
    %c0_i32_0 = arith.constant 0 : i32
    return %arg0, %c0_i32 : i32, i32
  }
  func.func @transform_4(%arg0: i32, %arg1: i32) -> (i32, i32) {
    %c0_i32 = arith.constant 0 : i32
    %c0_i32_0 = arith.constant 0 : i32
    %c0_i32_1 = arith.constant 0 : i32
    return %c0_i32, %c0_i32_0 : i32, i32
  }
  func.func @transform_5(%arg0: i32, %arg1: i32) -> (i32, i32) {
    %c0_i32 = arith.constant 0 : i32
    %c0_i32_0 = arith.constant 0 : i32
    %c0_i32_1 = arith.constant 0 : i32
    return %c0_i32, %c0_i32_0 : i32, i32
  }
  func.func @transform_6(%arg0: i32, %arg1: i32) -> (i32, i32) {
    %c0_i32 = arith.constant 0 : i32
    %c0_i32_0 = arith.constant 0 : i32
    %c0_i32_1 = arith.constant 0 : i32
    return %c0_i32, %c0_i32_0 : i32, i32
  }
  func.func @transform_7(%arg0: i32, %arg1: i32) -> (i32, i32) {
    %c0_i32 = arith.constant 0 : i32
    %c0_i32_0 = arith.constant 0 : i32
    return %arg0, %c0_i32 : i32, i32
  }
}

</mosaic_0001>

<llo_original>
// kernel: gnn_forward.2
$region0: #{gnn_forward.2}
  #allocation0 [shape = 'u32[]', space=smem, size = 0x4, offset = 0x4, fixed_abs, tag = 'smem constant byte address 0x4 - core index']
  #allocation1 [shape = 'u32[144,128]{1,0:T(1,128)}', space=vmem, size = 0x12000, scoped, tag = 'internal scratch']
  #allocation2 [shape = 'f32[128,128]{1,0:T(8,128)}', space=vmem, size = 0x10000, scoped, tag = 'scratch operand']
  %s0 = inlined_call_operand.hbm [shape: f32[128,128], index: 0, kind: input, shape index: {}]
  %s1 = inlined_call_operand.hbm [shape: f32[128,128], index: 1, kind: input, shape index: {}, may-alias: {1,2}]
  %s2 = inlined_call_operand.hbm [shape: f32[128,128], index: 2, kind: input, shape index: {}, may-alias: {1,2}]
  %s3 = inlined_call_operand.hbm [shape: f32[128,1], index: 3, kind: input, shape index: {}]
  %s4 = inlined_call_operand.hbm [shape: f32[128,128], index: 4, kind: input, shape index: {}]
  %s5 = inlined_call_operand.hbm [shape: f32[128,128], index: 5, kind: input, shape index: {}]
  %s6 = inlined_call_operand.hbm [shape: f32[1,128], index: 6, kind: input, shape index: {}]
  %s7 = inlined_call_operand.hbm [shape: f32[128,128], index: 7, kind: output, shape index: {}]
  %s8 = sld [smem:[#allocation0]]
  $region74: #{gnn_forward.2} parent=0
    _
  %s10 = ssub.s32 1, %s8
  %s11 = scalar_select 0, %s10, %s8
  $region1: #{gnn_forward.2} parent=0
    #allocation3 [shape = 'u8[65536]{0}', space=vmem, size = 0x10000, scoped, tag = 'input window, operand 0, single buffered']
    #allocation4 [shape = 's32[1]{0}', space=sflag, size = 0x4, scoped, tag = 'scoped memory for gnn_forward.2']
    #allocation5 [shape = 's32[1]{0}', space=sflag, size = 0x4, scoped, tag = 'scoped memory for gnn_forward.2']
    #allocation6 [shape = 'u8[65536]{0}', space=vmem, size = 0x10000, scoped, tag = 'input window, operand 1, single buffered']
    #allocation7 [shape = 's32[1]{0}', space=sflag, size = 0x4, scoped, tag = 'scoped memory for gnn_forward.2']
    #allocation8 [shape = 'u8[65536]{0}', space=vmem, size = 0x10000, scoped, tag = 'input window, operand 2, single buffered']
    #allocation9 [shape = 'u8[65536]{0}', space=vmem, size = 0x10000, scoped, tag = 'input window, operand 3, single buffered']
    #allocation10 [shape = 's32[1]{0}', space=sflag, size = 0x4, scoped, tag = 'scoped memory for gnn_forward.2']
    #allocation11 [shape = 'u8[65536]{0}', space=vmem, size = 0x10000, scoped, tag = 'input window, operand 4, single buffered']
    #allocation12 [shape = 'u8[65536]{0}', space=vmem, size = 0x10000, scoped, tag = 'input window, operand 5, single buffered']
    #allocation13 [shape = 's32[1]{0}', space=sflag, size = 0x4, scoped, tag = 'scoped memory for gnn_forward.2']
    #allocation14 [shape = 'u8[512]{0}', space=vmem, size = 0x400, scoped, tag = 'input window, operand 6, single buffered']
    #allocation15 [shape = 'u8[65536]{0}', space=vmem, size = 0x10000, scoped, tag = 'output window, operand 0, single buffered']
    %12 = vsyncpa [#allocation4], 0
    %13 = vsyncpa [#allocation7], 0
    %14 = vsyncpa [#allocation10], 0
    %15 = vsyncpa [#allocation13], 0
    %16 = vsyncpa [#allocation5], 0
    // Predicated region
    $region2: #{gnn_forward.2} parent=1 // pred_check
      _
    $region3: #{gnn_forward.2} parent=1 // pred_check_branch
      %18 = sbr.rel (0) target = $region5
    $region4: #{gnn_forward.2} parent=1 // pred_region
      %s20 = ssub.s32 2048, 2048
      %21 = vsyncadd [#allocation4], %s20
      %s22 = sshll.u32 [#allocation3], 4
      %s23 = int_to_ptr.vmem [resolvable:$true] %s22
      %28 = dma.hbm_to_vmem [thread:$0]  %s0, 2048, %s23, [#allocation4], 128, 128, 8
    $region5: #{gnn_forward.2} parent=1 // pred_fallthru
      _
    // Predicated region
    $region6: #{gnn_forward.2} parent=1 // pred_check
      _
    $region7: #{gnn_forward.2} parent=1 // pred_check_branch
      %30 = sbr.rel (0) target = $region9
    $region8: #{gnn_forward.2} parent=1 // pred_region
      %s32 = ssub.s32 2048, 2048
      %33 = vsyncadd [#allocation7], %s32
      %s34 = sshll.u32 [#allocation6], 4
      %s35 = int_to_ptr.vmem [resolvable:$true] %s34
      %40 = dma.hbm_to_vmem [thread:$0]  %s1, 2048, %s35, [#allocation7], 128, 128, 8
    $region9: #{gnn_forward.2} parent=1 // pred_fallthru
      _
    // Predicated region
    $region10: #{gnn_forward.2} parent=1 // pred_check
      _
    $region11: #{gnn_forward.2} parent=1 // pred_check_branch
      %42 = sbr.rel (0) target = $region13
    $region12: #{gnn_forward.2} parent=1 // pred_region
      %s44 = ssub.s32 2048, 2048
      %45 = vsyncadd [#allocation7], %s44
      %s46 = sshll.u32 [#allocation8], 4
      %s47 = int_to_ptr.vmem [resolvable:$true] %s46
      %52 = dma.hbm_to_vmem [thread:$0]  %s2, 2048, %s47, [#allocation7], 128, 128, 8
    $region13: #{gnn_forward.2} parent=1 // pred_fallthru
      _
    // Predicated region
    $region14: #{gnn_forward.2} parent=1 // pred_check
      _
    $region15: #{gnn_forward.2} parent=1 // pred_check_branch
      %54 = sbr.rel (0) target = $region17
    $region16: #{gnn_forward.2} parent=1 // pred_region
      %s56 = ssub.s32 2048, 2048
      %57 = vsyncadd [#allocation10], %s56
      %s58 = sshll.u32 [#allocation9], 4
      %s59 = int_to_ptr.vmem [resolvable:$true] %s58
      %64 = dma.hbm_to_vmem [thread:$0]  %s3, 2048, %s59, [#allocation10], 128, 128, 8
    $region17: #{gnn_forward.2} parent=1 // pred_fallthru
      _
    // Predicated region
    $region18: #{gnn_forward.2} parent=1 // pred_check
      _
    $region19: #{gnn_forward.2} parent=1 // pred_check_branch
      %66 = sbr.rel (0) target = $region21
    $region20: #{gnn_forward.2} parent=1 // pred_region
      %s68 = ssub.s32 2048, 2048
      %69 = vsyncadd [#allocation10], %s68
      %s70 = sshll.u32 [#allocation11], 4
      %s71 = int_to_ptr.vmem [resolvable:$true] %s70
      %76 = dma.hbm_to_vmem [thread:$0]  %s4, 2048, %s71, [#allocation10], 128, 128, 8
    $region21: #{gnn_forward.2} parent=1 // pred_fallthru
      _
    // Predicated region
    $region22: #{gnn_forward.2} parent=1 // pred_check
      _
    $region23: #{gnn_forward.2} parent=1 // pred_check_branch
      %78 = sbr.rel (0) target = $region25
    $region24: #{gnn_forward.2} parent=1 // pred_region
      %s80 = ssub.s32 2048, 2048
      %81 = vsyncadd [#allocation13], %s80
      %s82 = sshll.u32 [#allocation12], 4
      %s83 = int_to_ptr.vmem [resolvable:$true] %s82
      %88 = dma.hbm_to_vmem [thread:$0]  %s5, 2048, %s83, [#allocation13], 128, 128, 8
    $region25: #{gnn_forward.2} parent=1 // pred_fallthru
      _
    // Predicated region
    $region26: #{gnn_forward.2} parent=1 // pred_check
      _
    $region27: #{gnn_forward.2} parent=1 // pred_check_branch
      %90 = sbr.rel (0) target = $region29
    $region28: #{gnn_forward.2} parent=1 // pred_region
      %s92 = ssub.s32 16, 16
      %93 = vsyncadd [#allocation13], %s92
      %s95 = sshll.u32 [#allocation14], 4
      %s96 = int_to_ptr.vmem [resolvable:$true] %s95
      %98 = dma.hbm_to_vmem [thread:$0]  %s6, 16, %s96, [#allocation13]
    $region29: #{gnn_forward.2} parent=1 // pred_fallthru
      _
    // Predicated region
    $region30: #{gnn_forward.2} parent=1 // pred_check
      _
    $region31: #{gnn_forward.2} parent=1 // pred_check_branch
      %100 = sbr.rel (0) target = $region33
    $region32: #{gnn_forward.2} parent=1 // pred_region
      %101 = dma.done [#allocation4], 2048
    $region33: #{gnn_forward.2} parent=1 // pred_fallthru
      _
    // Predicated region
    $region34: #{gnn_forward.2} parent=1 // pred_check
      _
    $region35: #{gnn_forward.2} parent=1 // pred_check_branch
      %103 = sbr.rel (0) target = $region37
    $region36: #{gnn_forward.2} parent=1 // pred_region
      %104 = dma.done [#allocation7], 2048
    $region37: #{gnn_forward.2} parent=1 // pred_fallthru
      _
    // Predicated region
    $region38: #{gnn_forward.2} parent=1 // pred_check
      _
    $region39: #{gnn_forward.2} parent=1 // pred_check_branch
      %106 = sbr.rel (0) target = $region41
    $region40: #{gnn_forward.2} parent=1 // pred_region
      %107 = dma.done [#allocation7], 2048
    $region41: #{gnn_forward.2} parent=1 // pred_fallthru
      _
    // Predicated region
    $region42: #{gnn_forward.2} parent=1 // pred_check
      _
    $region43: #{gnn_forward.2} parent=1 // pred_check_branch
      %109 = sbr.rel (0) target = $region45
    $region44: #{gnn_forward.2} parent=1 // pred_region
      %110 = dma.done [#allocation10], 2048
    $region45: #{gnn_forward.2} parent=1 // pred_fallthru
      _
    // Predicated region
    $region46: #{gnn_forward.2} parent=1 // pred_check
      _
    $region47: #{gnn_forward.2} parent=1 // pred_check_branch
      %112 = sbr.rel (0) target = $region49
    $region48: #{gnn_forward.2} parent=1 // pred_region
      %113 = dma.done [#allocation10], 2048
    $region49: #{gnn_forward.2} parent=1 // pred_fallthru
      _
    // Predicated region
    $region50: #{gnn_forward.2} parent=1 // pred_check
      _
    $region51: #{gnn_forward.2} parent=1 // pred_check_branch
      %115 = sbr.rel (0) target = $region53
    $region52: #{gnn_forward.2} parent=1 // pred_region
      %116 = dma.done [#allocation13], 2048
    $region53: #{gnn_forward.2} parent=1 // pred_fallthru
      _
    // Predicated region
    $region54: #{gnn_forward.2} parent=1 // pred_check
      _
    $region55: #{gnn_forward.2} parent=1 // pred_check_branch
      %118 = sbr.rel (0) target = $region57
    $region56: #{gnn_forward.2} parent=1 // pred_region
      %119 = dma.done [#allocation13], 16
    $region57: #{gnn_forward.2} parent=1 // pred_fallthru
      _
    %p120 = scmp.eq.s32.totalorder 0, 0
    // Predicated region
    $region58: #{gnn_forward.2} parent=1 // pred_check
      %p121 = pneg %p120
    $region59: #{gnn_forward.2} parent=1 // pred_check_branch
      %123 = sbr.rel (%p121) target = $region61
    $region60: #{gnn_forward.2} parent=1 // pred_region
      %124 = vst [vmem:[#allocation2] sm:$0xff] 0.0
      %125 = vst [vmem:[#allocation2 + $0x8] sm:$0xff] 0.0
      %126 = vst [vmem:[#allocation2 + $0x10] sm:$0xff] 0.0
      %127 = vst [vmem:[#allocation2 + $0x18] sm:$0xff] 0.0
      %128 = vst [vmem:[#allocation2 + $0x20] sm:$0xff] 0.0
      %129 = vst [vmem:[#allocation2 + $0x28] sm:$0xff] 0.0
      %130 = vst [vmem:[#allocation2 + $0x30] sm:$0xff] 0.0
      %131 = vst [vmem:[#allocation2 + $0x38] sm:$0xff] 0.0
      %132 = vst [vmem:[#allocation2 + $0x40] sm:$0xff] 0.0
      %133 = vst [vmem:[#allocation2 + $0x48] sm:$0xff] 0.0
      %134 = vst [vmem:[#allocation2 + $0x50] sm:$0xff] 0.0
      %135 = vst [vmem:[#allocation2 + $0x58] sm:$0xff] 0.0
      %136 = vst [vmem:[#allocation2 + $0x60] sm:$0xff] 0.0
      %137 = vst [vmem:[#allocation2 + $0x68] sm:$0xff] 0.0
      %138 = vst [vmem:[#allocation2 + $0x70] sm:$0xff] 0.0
      %139 = vst [vmem:[#allocation2 + $0x78] sm:$0xff] 0.0
    $region61: #{gnn_forward.2} parent=1 // pred_fallthru
      _
    %v140 = vld [vmem:[#allocation2] sm:$0xff]
    %v141 = vld [vmem:[#allocation2 + $0x8] sm:$0xff]
    %v142 = vld [vmem:[#allocation2 + $0x10] sm:$0xff]
    %v143 = vld [vmem:[#allocation2 + $0x18] sm:$0xff]
    %v144 = vld [vmem:[#allocation2 + $0x20] sm:$0xff]
    %v145 = vld [vmem:[#allocation2 + $0x28] sm:$0xff]
    %v146 = vld [vmem:[#allocation2 + $0x30] sm:$0xff]
    %v147 = vld [vmem:[#allocation2 + $0x38] sm:$0xff]
    %v148 = vld [vmem:[#allocation2 + $0x40] sm:$0xff]
    %v149 = vld [vmem:[#allocation2 + $0x48] sm:$0xff]
    %v150 = vld [vmem:[#allocation2 + $0x50] sm:$0xff]
    %v151 = vld [vmem:[#allocation2 + $0x58] sm:$0xff]
    %v152 = vld [vmem:[#allocation2 + $0x60] sm:$0xff]
    %v153 = vld [vmem:[#allocation2 + $0x68] sm:$0xff]
    %v154 = vld [vmem:[#allocation2 + $0x70] sm:$0xff]
    %v155 = vld [vmem:[#allocation2 + $0x78] sm:$0xff]
    %v156 = vld [vmem:[#allocation3] sm:$0xff]
    %v157 = vld [vmem:[#allocation3 + $0x8] sm:$0xff]
    %v158 = vld [vmem:[#allocation3 + $0x10] sm:$0xff]
    %v159 = vld [vmem:[#allocation3 + $0x18] sm:$0xff]
    %v160 = vld [vmem:[#allocation3 + $0x20] sm:$0xff]
    %v161 = vld [vmem:[#allocation3 + $0x28] sm:$0xff]
    %v162 = vld [vmem:[#allocation3 + $0x30] sm:$0xff]
    %v163 = vld [vmem:[#allocation3 + $0x38] sm:$0xff]
    %v164 = vld [vmem:[#allocation3 + $0x40] sm:$0xff]
    %v165 = vld [vmem:[#allocation3 + $0x48] sm:$0xff]
    %v166 = vld [vmem:[#allocation3 + $0x50] sm:$0xff]
    %v167 = vld [vmem:[#allocation3 + $0x58] sm:$0xff]
    %v168 = vld [vmem:[#allocation3 + $0x60] sm:$0xff]
    %v169 = vld [vmem:[#allocation3 + $0x68] sm:$0xff]
    %v170 = vld [vmem:[#allocation3 + $0x70] sm:$0xff]
    %v171 = vld [vmem:[#allocation3 + $0x78] sm:$0xff]
    %v172 = vld [vmem:[#allocation6] sm:$0xff]
    %v173 = vld [vmem:[#allocation6 + $0x8] sm:$0xff]
    %v174 = vld [vmem:[#allocation6 + $0x10] sm:$0xff]
    %v175 = vld [vmem:[#allocation6 + $0x18] sm:$0xff]
    %v176 = vld [vmem:[#allocation6 + $0x20] sm:$0xff]
    %v177 = vld [vmem:[#allocation6 + $0x28] sm:$0xff]
    %v178 = vld [vmem:[#allocation6 + $0x30] sm:$0xff]
    %v179 = vld [vmem:[#allocation6 + $0x38] sm:$0xff]
    %v180 = vld [vmem:[#allocation6 + $0x40] sm:$0xff]
    %v181 = vld [vmem:[#allocation6 + $0x48] sm:$0xff]
    %v182 = vld [vmem:[#allocation6 + $0x50] sm:$0xff]
    %v183 = vld [vmem:[#allocation6 + $0x58] sm:$0xff]
    %v184 = vld [vmem:[#allocation6 + $0x60] sm:$0xff]
    %v185 = vld [vmem:[#allocation6 + $0x68] sm:$0xff]
    %v186 = vld [vmem:[#allocation6 + $0x70] sm:$0xff]
    %v187 = vld [vmem:[#allocation6 + $0x78] sm:$0xff]
    %188 = vmatprep.subr.mxu0 0.0
    %189 = vmatpush1.msra.mxu0 %v172
    %190 = vmatprep.subr.mxu0 0.0
    %191 = vmatpush1.msra.mxu0 %v173
    %192 = vmatprep.subr.mxu0 0.0
    %193 = vmatpush1.msra.mxu0 %v174
    %194 = vmatprep.subr.mxu0 0.0
    %195 = vmatpush1.msra.mxu0 %v175
    %196 = vmatprep.subr.mxu0 0.0
    %197 = vmatpush1.msra.mxu0 %v176
    %198 = vmatprep.subr.mxu0 0.0
    %199 = vmatpush1.msra.mxu0 %v177
    %200 = vmatprep.subr.mxu0 0.0
    %201 = vmatpush1.msra.mxu0 %v178
    %202 = vmatprep.subr.mxu0 0.0
    %203 = vmatpush1.msra.mxu0 %v179
    %204 = vmatprep.subr.mxu0 0.0
    %205 = vmatpush1.msra.mxu0 %v180
    %206 = vmatprep.subr.mxu0 0.0
    %207 = vmatpush1.msra.mxu0 %v181
    %208 = vmatprep.subr.mxu0 0.0
    %209 = vmatpush1.msra.mxu0 %v182
    %210 = vmatprep.subr.mxu0 0.0
    %211 = vmatpush1.msra.mxu0 %v183
    %212 = vmatprep.subr.mxu0 0.0
    %213 = vmatpush1.msra.mxu0 %v184
    %214 = vmatprep.subr.mxu0 0.0
    %215 = vmatpush1.msra.mxu0 %v185
    %216 = vmatprep.subr.mxu0 0.0
    %217 = vmatpush1.msra.mxu0 %v186
    %218 = vmatprep.subr.mxu0 0.0
    %219 = vmatpush1.msra.mxu0 %v187
    %220 = vmatprep.subr.mxu0 0.0
    %221 = vmatpush1.msra.mxu0 0.0
    %222 = vmatprep.subr.mxu0 0.0
    %223 = vmatpush1.msra.mxu0 0.0
    %224 = vmatprep.subr.mxu0 0.0
    %225 = vmatpush1.msra.mxu0 0.0
    %226 = vmatprep.subr.mxu0 0.0
    %227 = vmatpush1.msra.mxu0 0.0
    %228 = vmatprep.subr.mxu0 0.0
    %229 = vmatpush1.msra.mxu0 0.0
    %230 = vmatprep.subr.mxu0 0.0
    %231 = vmatpush1.msra.mxu0 0.0
    %232 = vmatprep.subr.mxu0 0.0
    %233 = vmatpush1.msra.mxu0 0.0
    %234 = vmatprep.subr.mxu0 0.0
    %235 = vmatpush1.msra.mxu0 0.0
    %236 = vmatprep.subr.mxu0 0.0
    %237 = vmatpush1.msra.mxu0 0.0
    %238 = vmatprep.subr.mxu0 0.0
    %239 = vmatpush1.msra.mxu0 0.0
    %240 = vmatprep.subr.mxu0 0.0
    %241 = vmatpush1.msra.mxu0 0.0
    %242 = vmatprep.subr.mxu0 0.0
    %243 = vmatpush1.msra.mxu0 0.0
    %244 = vmatprep.subr.mxu0 0.0
    %245 = vmatpush1.msra.mxu0 0.0
    %246 = vmatprep.subr.mxu0 0.0
    %247 = vmatpush1.msra.mxu0 0.0
    %248 = vmatprep.subr.mxu0 0.0
    %249 = vmatpush1.msra.mxu0 0.0
    %250 = vmatprep.subr.mxu0 0.0
    %251 = vmatpush1.msra.mxu0 0.0
    %252 = vmatprep.mubr.f32.mxu0 0.0
    %253 = vmatmul.mubr.f32.gmra.mrb[0].mxu0 %v156
    %v254 = vpop.f32.mrb[0].mxu0
    %v255 = vadd.f32 0.0, %v254
    %v256 = vpop.f32.mrb[0].mxu0
    %257 = vmatprep.mubr.f32.mxu0 0.0
    %258 = vmatmul.mubr.f32.gmra.mrb[0].mxu0 %v157
    %v259 = vpop.f32.mrb[0].mxu0
    %v260 = vadd.f32 0.0, %v259
    %v261 = vpop.f32.mrb[0].mxu0
    %262 = vmatprep.mubr.f32.mxu0 0.0
    %263 = vmatmul.mubr.f32.gmra.mrb[0].mxu0 %v158
    %v264 = vpop.f32.mrb[0].mxu0
    %v265 = vadd.f32 0.0, %v264
    %v266 = vpop.f32.mrb[0].mxu0
    %267 = vmatprep.mubr.f32.mxu0 0.0
    %268 = vmatmul.mubr.f32.gmra.mrb[0].mxu0 %v159
    %v269 = vpop.f32.mrb[0].mxu0
    %v270 = vadd.f32 0.0, %v269
    %v271 = vpop.f32.mrb[0].mxu0
    %272 = vmatprep.mubr.f32.mxu0 0.0
    %273 = vmatmul.mubr.f32.gmra.mrb[0].mxu0 %v160
    %v274 = vpop.f32.mrb[0].mxu0
    %v275 = vadd.f32 0.0, %v274
    %v276 = vpop.f32.mrb[0].mxu0
    %277 = vmatprep.mubr.f32.mxu0 0.0
    %278 = vmatmul.mubr.f32.gmra.mrb[0].mxu0 %v161
    %v279 = vpop.f32.mrb[0].mxu0
    %v280 = vadd.f32 0.0, %v279
    %v281 = vpop.f32.mrb[0].mxu0
    %282 = vmatprep.mubr.f32.mxu0 0.0
    %283 = vmatmul.mubr.f32.gmra.mrb[0].mxu0 %v162
    %v284 = vpop.f32.mrb[0].mxu0
    %v285 = vadd.f32 0.0, %v284
    %v286 = vpop.f32.mrb[0].mxu0
    %287 = vmatprep.mubr.f32.mxu0 0.0
    %288 = vmatmul.mubr.f32.gmra.mrb[0].mxu0 %v163
    %v289 = vpop.f32.mrb[0].mxu0
    %v290 = vadd.f32 0.0, %v289
    %v291 = vpop.f32.mrb[0].mxu0
    %292 = vmatprep.mubr.f32.mxu0 0.0
    %293 = vmatmul.mubr.f32.gmra.mrb[0].mxu0 %v164
    %v294 = vpop.f32.mrb[0].mxu0
    %v295 = vadd.f32 0.0, %v294
    %v296 = vpop.f32.mrb[0].mxu0
    %297 = vmatprep.mubr.f32.mxu0 0.0
    %298 = vmatmul.mubr.f32.gmra.mrb[0].mxu0 %v165
    %v299 = vpop.f32.mrb[0].mxu0
    %v300 = vadd.f32 0.0, %v299
    %v301 = vpop.f32.mrb[0].mxu0
    %302 = vmatprep.mubr.f32.mxu0 0.0
    %303 = vmatmul.mubr.f32.gmra.mrb[0].mxu0 %v166
    %v304 = vpop.f32.mrb[0].mxu0
    %v305 = vadd.f32 0.0, %v304
    %v306 = vpop.f32.mrb[0].mxu0
    %307 = vmatprep.mubr.f32.mxu0 0.0
    %308 = vmatmul.mubr.f32.gmra.mrb[0].mxu0 %v167
    %v309 = vpop.f32.mrb[0].mxu0
    %v310 = vadd.f32 0.0, %v309
    %v311 = vpop.f32.mrb[0].mxu0
    %312 = vmatprep.mubr.f32.mxu0 0.0
    %313 = vmatmul.mubr.f32.gmra.mrb[0].mxu0 %v168
    %v314 = vpop.f32.mrb[0].mxu0
    %v315 = vadd.f32 0.0, %v314
    %v316 = vpop.f32.mrb[0].mxu0
    %317 = vmatprep.mubr.f32.mxu0 0.0
    %318 = vmatmul.mubr.f32.gmra.mrb[0].mxu0 %v169
    %v319 = vpop.f32.mrb[0].mxu0
    %v320 = vadd.f32 0.0, %v319
    %v321 = vpop.f32.mrb[0].mxu0
    %322 = vmatprep.mubr.f32.mxu0 0.0
    %323 = vmatmul.mubr.f32.gmra.mrb[0].mxu0 %v170
    %v324 = vpop.f32.mrb[0].mxu0
    %v325 = vadd.f32 0.0, %v324
    %v326 = vpop.f32.mrb[0].mxu0
    %327 = vmatprep.mubr.f32.mxu0 0.0
    %328 = vmatmul.mubr.f32.gmra.mrb[0].mxu0 %v171
    %v329 = vpop.f32.mrb[0].mxu0
    %v330 = vadd.f32 0.0, %v329
    %v331 = vpop.f32.mrb[0].mxu0
    %332 = vdwg.mxu0
    %v333 = vadd.f32 %v140, %v255
    %v334 = vadd.f32 %v141, %v260
    %v335 = vadd.f32 %v142, %v265
    %v336 = vadd.f32 %v143, %v270
    %v337 = vadd.f32 %v144, %v275
    %v338 = vadd.f32 %v145, %v280
    %v339 = vadd.f32 %v146, %v285
    %v340 = vadd.f32 %v147, %v290
    %v341 = vadd.f32 %v148, %v295
    %v342 = vadd.f32 %v149, %v300
    %v343 = vadd.f32 %v150, %v305
    %v344 = vadd.f32 %v151, %v310
    %v345 = vadd.f32 %v152, %v315
    %v346 = vadd.f32 %v153, %v320
    %v347 = vadd.f32 %v154, %v325
    %v348 = vadd.f32 %v155, %v330
    %349 = vst [vmem:[#allocation2] sm:$0xff] %v333
    %350 = vst [vmem:[#allocation2 + $0x8] sm:$0xff] %v334
    %351 = vst [vmem:[#allocation2 + $0x10] sm:$0xff] %v335
    %352 = vst [vmem:[#allocation2 + $0x18] sm:$0xff] %v336
    %353 = vst [vmem:[#allocation2 + $0x20] sm:$0xff] %v337
    %354 = vst [vmem:[#allocation2 + $0x28] sm:$0xff] %v338
    %355 = vst [vmem:[#allocation2 + $0x30] sm:$0xff] %v339
    %356 = vst [vmem:[#allocation2 + $0x38] sm:$0xff] %v340
    %357 = vst [vmem:[#allocation2 + $0x40] sm:$0xff] %v341
    %358 = vst [vmem:[#allocation2 + $0x48] sm:$0xff] %v342
    %359 = vst [vmem:[#allocation2 + $0x50] sm:$0xff] %v343
    %360 = vst [vmem:[#allocation2 + $0x58] sm:$0xff] %v344
    %361 = vst [vmem:[#allocation2 + $0x60] sm:$0xff] %v345
    %362 = vst [vmem:[#allocation2 + $0x68] sm:$0xff] %v346
    %363 = vst [vmem:[#allocation2 + $0x70] sm:$0xff] %v347
    %364 = vst [vmem:[#allocation2 + $0x78] sm:$0xff] %v348
    // Predicated region
    $region62: #{gnn_forward.2} parent=1 // pred_check
      %p365 = pneg %p120
    $region63: #{gnn_forward.2} parent=1 // pred_check_branch
      %367 = sbr.rel (%p365) target = $region65
    $region64: #{gnn_forward.2} parent=1 // pred_region
      %v368 = vld [vmem:[#allocation2] sm:$0xff]
      %v369 = vld [vmem:[#allocation2 + $0x8] sm:$0xff]
      %v370 = vld [vmem:[#allocation2 + $0x10] sm:$0xff]
      %v371 = vld [vmem:[#allocation2 + $0x18] sm:$0xff]
      %v372 = vld [vmem:[#allocation2 + $0x20] sm:$0xff]
      %v373 = vld [vmem:[#allocation2 + $0x28] sm:$0xff]
      %v374 = vld [vmem:[#allocation2 + $0x30] sm:$0xff]
      %v375 = vld [vmem:[#allocation2 + $0x38] sm:$0xff]
      %v376 = vld [vmem:[#allocation2 + $0x40] sm:$0xff]
      %v377 = vld [vmem:[#allocation2 + $0x48] sm:$0xff]
      %v378 = vld [vmem:[#allocation2 + $0x50] sm:$0xff]
      %v379 = vld [vmem:[#allocation2 + $0x58] sm:$0xff]
      %v380 = vld [vmem:[#allocation2 + $0x60] sm:$0xff]
      %v381 = vld [vmem:[#allocation2 + $0x68] sm:$0xff]
      %v382 = vld [vmem:[#allocation2 + $0x70] sm:$0xff]
      %v383 = vld [vmem:[#allocation2 + $0x78] sm:$0xff]
      %v384 = vld [vmem:[#allocation9] sm:$0xff]
      %v385 = vld [vmem:[#allocation9 + $0x8] sm:$0xff]
      %v386 = vld [vmem:[#allocation9 + $0x10] sm:$0xff]
      %v387 = vld [vmem:[#allocation9 + $0x18] sm:$0xff]
      %v388 = vld [vmem:[#allocation9 + $0x20] sm:$0xff]
      %v389 = vld [vmem:[#allocation9 + $0x28] sm:$0xff]
      %v390 = vld [vmem:[#allocation9 + $0x30] sm:$0xff]
      %v391 = vld [vmem:[#allocation9 + $0x38] sm:$0xff]
      %v392 = vld [vmem:[#allocation9 + $0x40] sm:$0xff]
      %v393 = vld [vmem:[#allocation9 + $0x48] sm:$0xff]
      %v394 = vld [vmem:[#allocation9 + $0x50] sm:$0xff]
      %v395 = vld [vmem:[#allocation9 + $0x58] sm:$0xff]
      %v396 = vld [vmem:[#allocation9 + $0x60] sm:$0xff]
      %v397 = vld [vmem:[#allocation9 + $0x68] sm:$0xff]
      %v398 = vld [vmem:[#allocation9 + $0x70] sm:$0xff]
      %v399 = vld [vmem:[#allocation9 + $0x78] sm:$0xff]
      %401 = vset.pattern.permute.xlu0 0
      %402 = vperm.xlu0 %401, %v384
      %v403 = vpop.permute.xlu0 %402
      %406 = vset.pattern.permute.xlu0 0
      %407 = vperm.xlu0 %406, %v385
      %v408 = vpop.permute.xlu0 %407
      %411 = vset.pattern.permute.xlu0 0
      %412 = vperm.xlu0 %411, %v386
      %v413 = vpop.permute.xlu0 %412
      %416 = vset.pattern.permute.xlu0 0
      %417 = vperm.xlu0 %416, %v387
      %v418 = vpop.permute.xlu0 %417
      %421 = vset.pattern.permute.xlu0 0
      %422 = vperm.xlu0 %421, %v388
      %v423 = vpop.permute.xlu0 %422
      %426 = vset.pattern.permute.xlu0 0
      %427 = vperm.xlu0 %426, %v389
      %v428 = vpop.permute.xlu0 %427
      %431 = vset.pattern.permute.xlu0 0
      %432 = vperm.xlu0 %431, %v390
      %v433 = vpop.permute.xlu0 %432
      %436 = vset.pattern.permute.xlu0 0
      %437 = vperm.xlu0 %436, %v391
      %v438 = vpop.permute.xlu0 %437
      %441 = vset.pattern.permute.xlu0 0
      %442 = vperm.xlu0 %441, %v392
      %v443 = vpop.permute.xlu0 %442
      %446 = vset.pattern.permute.xlu0 0
      %447 = vperm.xlu0 %446, %v393
      %v448 = vpop.permute.xlu0 %447
      %451 = vset.pattern.permute.xlu0 0
      %452 = vperm.xlu0 %451, %v394
      %v453 = vpop.permute.xlu0 %452
      %456 = vset.pattern.permute.xlu0 0
      %457 = vperm.xlu0 %456, %v395
      %v458 = vpop.permute.xlu0 %457
      %461 = vset.pattern.permute.xlu0 0
      %462 = vperm.xlu0 %461, %v396
      %v463 = vpop.permute.xlu0 %462
      %466 = vset.pattern.permute.xlu0 0
      %467 = vperm.xlu0 %466, %v397
      %v468 = vpop.permute.xlu0 %467
      %471 = vset.pattern.permute.xlu0 0
      %472 = vperm.xlu0 %471, %v398
      %v473 = vpop.permute.xlu0 %472
      %476 = vset.pattern.permute.xlu0 0
      %477 = vperm.xlu0 %476, %v399
      %v478 = vpop.permute.xlu0 %477
      %v480 = vmul.f32 %v368, %v403
      %v481 = vmul.f32 %v369, %v408
      %v482 = vmul.f32 %v370, %v413
      %v483 = vmul.f32 %v371, %v418
      %v484 = vmul.f32 %v372, %v423
      %v485 = vmul.f32 %v373, %v428
      %v486 = vmul.f32 %v374, %v433
      %v487 = vmul.f32 %v375, %v438
      %v488 = vmul.f32 %v376, %v443
      %v489 = vmul.f32 %v377, %v448
      %v490 = vmul.f32 %v378, %v453
      %v491 = vmul.f32 %v379, %v458
      %v492 = vmul.f32 %v380, %v463
      %v493 = vmul.f32 %v381, %v468
      %v494 = vmul.f32 %v382, %v473
      %v495 = vmul.f32 %v383, %v478
      %v496 = vld [vmem:[#allocation8] sm:$0xff]
      %v497 = vld [vmem:[#allocation8 + $0x8] sm:$0xff]
      %v498 = vld [vmem:[#allocation8 + $0x10] sm:$0xff]
      %v499 = vld [vmem:[#allocation8 + $0x18] sm:$0xff]
      %v500 = vld [vmem:[#allocation8 + $0x20] sm:$0xff]
      %v501 = vld [vmem:[#allocation8 + $0x28] sm:$0xff]
      %v502 = vld [vmem:[#allocation8 + $0x30] sm:$0xff]
      %v503 = vld [vmem:[#allocation8 + $0x38] sm:$0xff]
      %v504 = vld [vmem:[#allocation8 + $0x40] sm:$0xff]
      %v505 = vld [vmem:[#allocation8 + $0x48] sm:$0xff]
      %v506 = vld [vmem:[#allocation8 + $0x50] sm:$0xff]
      %v507 = vld [vmem:[#allocation8 + $0x58] sm:$0xff]
      %v508 = vld [vmem:[#allocation8 + $0x60] sm:$0xff]
      %v509 = vld [vmem:[#allocation8 + $0x68] sm:$0xff]
      %v510 = vld [vmem:[#allocation8 + $0x70] sm:$0xff]
      %v511 = vld [vmem:[#allocation8 + $0x78] sm:$0xff]
      %v512 = vld [vmem:[#allocation11] sm:$0xff]
      %v513 = vld [vmem:[#allocation11 + $0x8] sm:$0xff]
      %v514 = vld [vmem:[#allocation11 + $0x10] sm:$0xff]
      %v515 = vld [vmem:[#allocation11 + $0x18] sm:$0xff]
      %v516 = vld [vmem:[#allocation11 + $0x20] sm:$0xff]
      %v517 = vld [vmem:[#allocation11 + $0x28] sm:$0xff]
      %v518 = vld [vmem:[#allocation11 + $0x30] sm:$0xff]
      %v519 = vld [vmem:[#allocation11 + $0x38] sm:$0xff]
      %v520 = vld [vmem:[#allocation11 + $0x40] sm:$0xff]
      %v521 = vld [vmem:[#allocation11 + $0x48] sm:$0xff]
      %v522 = vld [vmem:[#allocation11 + $0x50] sm:$0xff]
      %v523 = vld [vmem:[#allocation11 + $0x58] sm:$0xff]
      %v524 = vld [vmem:[#allocation11 + $0x60] sm:$0xff]
      %v525 = vld [vmem:[#allocation11 + $0x68] sm:$0xff]
      %v526 = vld [vmem:[#allocation11 + $0x70] sm:$0xff]
      %v527 = vld [vmem:[#allocation11 + $0x78] sm:$0xff]
      %v528 = vld [vmem:[#allocation12] sm:$0xff]
      %v529 = vld [vmem:[#allocation12 + $0x8] sm:$0xff]
      %v530 = vld [vmem:[#allocation12 + $0x10] sm:$0xff]
      %v531 = vld [vmem:[#allocation12 + $0x18] sm:$0xff]
      %v532 = vld [vmem:[#allocation12 + $0x20] sm:$0xff]
      %v533 = vld [vmem:[#allocation12 + $0x28] sm:$0xff]
      %v534 = vld [vmem:[#allocation12 + $0x30] sm:$0xff]
      %v535 = vld [vmem:[#allocation12 + $0x38] sm:$0xff]
      %v536 = vld [vmem:[#allocation12 + $0x40] sm:$0xff]
      %v537 = vld [vmem:[#allocation12 + $0x48] sm:$0xff]
      %v538 = vld [vmem:[#allocation12 + $0x50] sm:$0xff]
      %v539 = vld [vmem:[#allocation12 + $0x58] sm:$0xff]
      %v540 = vld [vmem:[#allocation12 + $0x60] sm:$0xff]
      %v541 = vld [vmem:[#allocation12 + $0x68] sm:$0xff]
      %v542 = vld [vmem:[#allocation12 + $0x70] sm:$0xff]
      %v543 = vld [vmem:[#allocation12 + $0x78] sm:$0xff]
      %544 = vmatprep.subr.mxu0 0.0
      %545 = vmatpush1.msra.mxu0 %v528
      %546 = vmatprep.subr.mxu0 0.0
      %547 = vmatpush1.msra.mxu0 %v529
      %548 = vmatprep.subr.mxu0 0.0
      %549 = vmatpush1.msra.mxu0 %v530
      %550 = vmatprep.subr.mxu0 0.0
      %551 = vmatpush1.msra.mxu0 %v531
      %552 = vmatprep.subr.mxu0 0.0
      %553 = vmatpush1.msra.mxu0 %v532
      %554 = vmatprep.subr.mxu0 0.0
      %555 = vmatpush1.msra.mxu0 %v533
      %556 = vmatprep.subr.mxu0 0.0
      %557 = vmatpush1.msra.mxu0 %v534
      %558 = vmatprep.subr.mxu0 0.0
      %559 = vmatpush1.msra.mxu0 %v535
      %560 = vmatprep.subr.mxu0 0.0
      %561 = vmatpush1.msra.mxu0 %v536
      %562 = vmatprep.subr.mxu0 0.0
      %563 = vmatpush1.msra.mxu0 %v537
      %564 = vmatprep.subr.mxu0 0.0
      %565 = vmatpush1.msra.mxu0 %v538
      %566 = vmatprep.subr.mxu0 0.0
      %567 = vmatpush1.msra.mxu0 %v539
      %568 = vmatprep.subr.mxu0 0.0
      %569 = vmatpush1.msra.mxu0 %v540
      %570 = vmatprep.subr.mxu0 0.0
      %571 = vmatpush1.msra.mxu0 %v541
      %572 = vmatprep.subr.mxu0 0.0
      %573 = vmatpush1.msra.mxu0 %v542
      %574 = vmatprep.subr.mxu0 0.0
      %575 = vmatpush1.msra.mxu0 %v543
      %576 = vmatprep.subr.mxu0 0.0
      %577 = vmatpush1.msra.mxu0 0.0
      %578 = vmatprep.subr.mxu0 0.0
      %579 = vmatpush1.msra.mxu0 0.0
      %580 = vmatprep.subr.mxu0 0.0
      %581 = vmatpush1.msra.mxu0 0.0
      %582 = vmatprep.subr.mxu0 0.0
      %583 = vmatpush1.msra.mxu0 0.0
      %584 = vmatprep.subr.mxu0 0.0
      %585 = vmatpush1.msra.mxu0 0.0
      %586 = vmatprep.subr.mxu0 0.0
      %587 = vmatpush1.msra.mxu0 0.0
      %588 = vmatprep.subr.mxu0 0.0
      %589 = vmatpush1.msra.mxu0 0.0
      %590 = vmatprep.subr.mxu0 0.0
      %591 = vmatpush1.msra.mxu0 0.0
      %592 = vmatprep.subr.mxu0 0.0
      %593 = vmatpush1.msra.mxu0 0.0
      %594 = vmatprep.subr.mxu0 0.0
      %595 = vmatpush1.msra.mxu0 0.0
      %596 = vmatprep.subr.mxu0 0.0
      %597 = vmatpush1.msra.mxu0 0.0
      %598 = vmatprep.subr.mxu0 0.0
      %599 = vmatpush1.msra.mxu0 0.0
      %600 = vmatprep.subr.mxu0 0.0
      %601 = vmatpush1.msra.mxu0 0.0
      %602 = vmatprep.subr.mxu0 0.0
      %603 = vmatpush1.msra.mxu0 0.0
      %604 = vmatprep.subr.mxu0 0.0
      %605 = vmatpush1.msra.mxu0 0.0
      %606 = vmatprep.subr.mxu0 0.0
      %607 = vmatpush1.msra.mxu0 0.0
      %608 = vmatprep.mubr.f32.mxu0 0.0
      %609 = vmatmul.mubr.f32.gmra.mrb[0].mxu0 %v480
      %v610 = vpop.f32.mrb[0].mxu0
      %v611 = vadd.f32 0.0, %v610
      %v612 = vpop.f32.mrb[0].mxu0
      %613 = vmatprep.mubr.f32.mxu0 0.0
      %614 = vmatmul.mubr.f32.gmra.mrb[0].mxu0 %v481
      %v615 = vpop.f32.mrb[0].mxu0
      %v616 = vadd.f32 0.0, %v615
      %v617 = vpop.f32.mrb[0].mxu0
      %618 = vmatprep.mubr.f32.mxu0 0.0
      %619 = vmatmul.mubr.f32.gmra.mrb[0].mxu0 %v482
      %v620 = vpop.f32.mrb[0].mxu0
      %v621 = vadd.f32 0.0, %v620
      %v622 = vpop.f32.mrb[0].mxu0
      %623 = vmatprep.mubr.f32.mxu0 0.0
      %624 = vmatmul.mubr.f32.gmra.mrb[0].mxu0 %v483
      %v625 = vpop.f32.mrb[0].mxu0
      %v626 = vadd.f32 0.0, %v625
      %v627 = vpop.f32.mrb[0].mxu0
      %628 = vmatprep.mubr.f32.mxu0 0.0
      %629 = vmatmul.mubr.f32.gmra.mrb[0].mxu0 %v484
      %v630 = vpop.f32.mrb[0].mxu0
      %v631 = vadd.f32 0.0, %v630
      %v632 = vpop.f32.mrb[0].mxu0
      %633 = vmatprep.mubr.f32.mxu0 0.0
      %634 = vmatmul.mubr.f32.gmra.mrb[0].mxu0 %v485
      %v635 = vpop.f32.mrb[0].mxu0
      %v636 = vadd.f32 0.0, %v635
      %v637 = vpop.f32.mrb[0].mxu0
      %638 = vmatprep.mubr.f32.mxu0 0.0
      %639 = vmatmul.mubr.f32.gmra.mrb[0].mxu0 %v486
      %v640 = vpop.f32.mrb[0].mxu0
      %v641 = vadd.f32 0.0, %v640
      %v642 = vpop.f32.mrb[0].mxu0
      %643 = vmatprep.mubr.f32.mxu0 0.0
      %644 = vmatmul.mubr.f32.gmra.mrb[0].mxu0 %v487
      %v645 = vpop.f32.mrb[0].mxu0
      %v646 = vadd.f32 0.0, %v645
      %v647 = vpop.f32.mrb[0].mxu0
      %648 = vmatprep.mubr.f32.mxu0 0.0
      %649 = vmatmul.mubr.f32.gmra.mrb[0].mxu0 %v488
      %v650 = vpop.f32.mrb[0].mxu0
      %v651 = vadd.f32 0.0, %v650
      %v652 = vpop.f32.mrb[0].mxu0
      %653 = vmatprep.mubr.f32.mxu0 0.0
      %654 = vmatmul.mubr.f32.gmra.mrb[0].mxu0 %v489
      %v655 = vpop.f32.mrb[0].mxu0
      %v656 = vadd.f32 0.0, %v655
      %v657 = vpop.f32.mrb[0].mxu0
      %658 = vmatprep.mubr.f32.mxu0 0.0
      %659 = vmatmul.mubr.f32.gmra.mrb[0].mxu0 %v490
      %v660 = vpop.f32.mrb[0].mxu0
      %v661 = vadd.f32 0.0, %v660
      %v662 = vpop.f32.mrb[0].mxu0
      %663 = vmatprep.mubr.f32.mxu0 0.0
      %664 = vmatmul.mubr.f32.gmra.mrb[0].mxu0 %v491
      %v665 = vpop.f32.mrb[0].mxu0
      %v666 = vadd.f32 0.0, %v665
      %v667 = vpop.f32.mrb[0].mxu0
      %668 = vmatprep.mubr.f32.mxu0 0.0
      %669 = vmatmul.mubr.f32.gmra.mrb[0].mxu0 %v492
      %v670 = vpop.f32.mrb[0].mxu0
      %v671 = vadd.f32 0.0, %v670
      %v672 = vpop.f32.mrb[0].mxu0
      %673 = vmatprep.mubr.f32.mxu0 0.0
      %674 = vmatmul.mubr.f32.gmra.mrb[0].mxu0 %v493
      %v675 = vpop.f32.mrb[0].mxu0
      %v676 = vadd.f32 0.0, %v675
      %v677 = vpop.f32.mrb[0].mxu0
      %678 = vmatprep.mubr.f32.mxu0 0.0
      %679 = vmatmul.mubr.f32.gmra.mrb[0].mxu0 %v494
      %v680 = vpop.f32.mrb[0].mxu0
      %v681 = vadd.f32 0.0, %v680
      %v682 = vpop.f32.mrb[0].mxu0
      %683 = vmatprep.mubr.f32.mxu0 0.0
      %684 = vmatmul.mubr.f32.gmra.mrb[0].mxu0 %v495
      %v685 = vpop.f32.mrb[0].mxu0
      %v686 = vadd.f32 0.0, %v685
      %v687 = vpop.f32.mrb[0].mxu0
      %688 = vdwg.mxu0
      %689 = vmatprep.subr.mxu0 0.0
      %690 = vmatpush1.msra.mxu0 %v512
      %691 = vmatprep.subr.mxu0 0.0
      %692 = vmatpush1.msra.mxu0 %v513
      %693 = vmatprep.subr.mxu0 0.0
      %694 = vmatpush1.msra.mxu0 %v514
      %695 = vmatprep.subr.mxu0 0.0
      %696 = vmatpush1.msra.mxu0 %v515
      %697 = vmatprep.subr.mxu0 0.0
      %698 = vmatpush1.msra.mxu0 %v516
      %699 = vmatprep.subr.mxu0 0.0
      %700 = vmatpush1.msra.mxu0 %v517
      %701 = vmatprep.subr.mxu0 0.0
      %702 = vmatpush1.msra.mxu0 %v518
      %703 = vmatprep.subr.mxu0 0.0
      %704 = vmatpush1.msra.mxu0 %v519
      %705 = vmatprep.subr.mxu0 0.0
      %706 = vmatpush1.msra.mxu0 %v520
      %707 = vmatprep.subr.mxu0 0.0
      %708 = vmatpush1.msra.mxu0 %v521
      %709 = vmatprep.subr.mxu0 0.0
      %710 = vmatpush1.msra.mxu0 %v522
      %711 = vmatprep.subr.mxu0 0.0
      %712 = vmatpush1.msra.mxu0 %v523
      %713 = vmatprep.subr.mxu0 0.0
      %714 = vmatpush1.msra.mxu0 %v524
      %715 = vmatprep.subr.mxu0 0.0
      %716 = vmatpush1.msra.mxu0 %v525
      %717 = vmatprep.subr.mxu0 0.0
      %718 = vmatpush1.msra.mxu0 %v526
      %719 = vmatprep.subr.mxu0 0.0
      %720 = vmatpush1.msra.mxu0 %v527
      %721 = vmatprep.subr.mxu0 0.0
      %722 = vmatpush1.msra.mxu0 0.0
      %723 = vmatprep.subr.mxu0 0.0
      %724 = vmatpush1.msra.mxu0 0.0
      %725 = vmatprep.subr.mxu0 0.0
      %726 = vmatpush1.msra.mxu0 0.0
      %727 = vmatprep.subr.mxu0 0.0
      %728 = vmatpush1.msra.mxu0 0.0
      %729 = vmatprep.subr.mxu0 0.0
      %730 = vmatpush1.msra.mxu0 0.0
      %731 = vmatprep.subr.mxu0 0.0
      %732 = vmatpush1.msra.mxu0 0.0
      %733 = vmatprep.subr.mxu0 0.0
      %734 = vmatpush1.msra.mxu0 0.0
      %735 = vmatprep.subr.mxu0 0.0
      %736 = vmatpush1.msra.mxu0 0.0
      %737 = vmatprep.subr.mxu0 0.0
      %738 = vmatpush1.msra.mxu0 0.0
      %739 = vmatprep.subr.mxu0 0.0
      %740 = vmatpush1.msra.mxu0 0.0
      %741 = vmatprep.subr.mxu0 0.0
      %742 = vmatpush1.msra.mxu0 0.0
      %743 = vmatprep.subr.mxu0 0.0
      %744 = vmatpush1.msra.mxu0 0.0
      %745 = vmatprep.subr.mxu0 0.0
      %746 = vmatpush1.msra.mxu0 0.0
      %747 = vmatprep.subr.mxu0 0.0
      %748 = vmatpush1.msra.mxu0 0.0
      %749 = vmatprep.subr.mxu0 0.0
      %750 = vmatpush1.msra.mxu0 0.0
      %751 = vmatprep.subr.mxu0 0.0
      %752 = vmatpush1.msra.mxu0 0.0
      %753 = vmatprep.mubr.f32.mxu0 0.0
      %754 = vmatmul.mubr.f32.gmra.mrb[0].mxu0 %v496
      %v755 = vpop.f32.mrb[0].mxu0
      %v756 = vadd.f32 %v611, %v755
      %v757 = vpop.f32.mrb[0].mxu0
      %758 = vmatprep.mubr.f32.mxu0 0.0
      %759 = vmatmul.mubr.f32.gmra.mrb[0].mxu0 %v497
      %v760 = vpop.f32.mrb[0].mxu0
      %v761 = vadd.f32 %v616, %v760
      %v762 = vpop.f32.mrb[0].mxu0
      %763 = vmatprep.mubr.f32.mxu0 0.0
      %764 = vmatmul.mubr.f32.gmra.mrb[0].mxu0 %v498
      %v765 = vpop.f32.mrb[0].mxu0
      %v766 = vadd.f32 %v621, %v765
      %v767 = vpop.f32.mrb[0].mxu0
      %768 = vmatprep.mubr.f32.mxu0 0.0
      %769 = vmatmul.mubr.f32.gmra.mrb[0].mxu0 %v499
      %v770 = vpop.f32.mrb[0].mxu0
      %v771 = vadd.f32 %v626, %v770
      %v772 = vpop.f32.mrb[0].mxu0
      %773 = vmatprep.mubr.f32.mxu0 0.0
      %774 = vmatmul.mubr.f32.gmra.mrb[0].mxu0 %v500
      %v775 = vpop.f32.mrb[0].mxu0
      %v776 = vadd.f32 %v631, %v775
      %v777 = vpop.f32.mrb[0].mxu0
      %778 = vmatprep.mubr.f32.mxu0 0.0
      %779 = vmatmul.mubr.f32.gmra.mrb[0].mxu0 %v501
      %v780 = vpop.f32.mrb[0].mxu0
      %v781 = vadd.f32 %v636, %v780
      %v782 = vpop.f32.mrb[0].mxu0
      %783 = vmatprep.mubr.f32.mxu0 0.0
      %784 = vmatmul.mubr.f32.gmra.mrb[0].mxu0 %v502
      %v785 = vpop.f32.mrb[0].mxu0
      %v786 = vadd.f32 %v641, %v785
      %v787 = vpop.f32.mrb[0].mxu0
      %788 = vmatprep.mubr.f32.mxu0 0.0
      %789 = vmatmul.mubr.f32.gmra.mrb[0].mxu0 %v503
      %v790 = vpop.f32.mrb[0].mxu0
      %v791 = vadd.f32 %v646, %v790
      %v792 = vpop.f32.mrb[0].mxu0
      %793 = vmatprep.mubr.f32.mxu0 0.0
      %794 = vmatmul.mubr.f32.gmra.mrb[0].mxu0 %v504
      %v795 = vpop.f32.mrb[0].mxu0
      %v796 = vadd.f32 %v651, %v795
      %v797 = vpop.f32.mrb[0].mxu0
      %798 = vmatprep.mubr.f32.mxu0 0.0
      %799 = vmatmul.mubr.f32.gmra.mrb[0].mxu0 %v505
      %v800 = vpop.f32.mrb[0].mxu0
      %v801 = vadd.f32 %v656, %v800
      %v802 = vpop.f32.mrb[0].mxu0
      %803 = vmatprep.mubr.f32.mxu0 0.0
      %804 = vmatmul.mubr.f32.gmra.mrb[0].mxu0 %v506
      %v805 = vpop.f32.mrb[0].mxu0
      %v806 = vadd.f32 %v661, %v805
      %v807 = vpop.f32.mrb[0].mxu0
      %808 = vmatprep.mubr.f32.mxu0 0.0
      %809 = vmatmul.mubr.f32.gmra.mrb[0].mxu0 %v507
      %v810 = vpop.f32.mrb[0].mxu0
      %v811 = vadd.f32 %v666, %v810
      %v812 = vpop.f32.mrb[0].mxu0
      %813 = vmatprep.mubr.f32.mxu0 0.0
      %814 = vmatmul.mubr.f32.gmra.mrb[0].mxu0 %v508
      %v815 = vpop.f32.mrb[0].mxu0
      %v816 = vadd.f32 %v671, %v815
      %v817 = vpop.f32.mrb[0].mxu0
      %818 = vmatprep.mubr.f32.mxu0 0.0
      %819 = vmatmul.mubr.f32.gmra.mrb[0].mxu0 %v509
      %v820 = vpop.f32.mrb[0].mxu0
      %v821 = vadd.f32 %v676, %v820
      %v822 = vpop.f32.mrb[0].mxu0
      %823 = vmatprep.mubr.f32.mxu0 0.0
      %824 = vmatmul.mubr.f32.gmra.mrb[0].mxu0 %v510
      %v825 = vpop.f32.mrb[0].mxu0
      %v826 = vadd.f32 %v681, %v825
      %v827 = vpop.f32.mrb[0].mxu0
      %828 = vmatprep.mubr.f32.mxu0 0.0
      %829 = vmatmul.mubr.f32.gmra.mrb[0].mxu0 %v511
      %v830 = vpop.f32.mrb[0].mxu0
      %v831 = vadd.f32 %v686, %v830
      %v832 = vpop.f32.mrb[0].mxu0
      %833 = vdwg.mxu0
      %v834 = vld [vmem:[#allocation14] sm:$0x1]
      %v836 = vlaneseq
      %v837 = vshrl.u32 %v836, 7
      %v838 = vsub.s32 0, %v837
      %v839 = vrot.slane %v834, %v838
      %v841 = vadd.f32 %v756, %v839
      %v842 = vadd.f32 %v761, %v839
      %v843 = vadd.f32 %v766, %v839
      %v844 = vadd.f32 %v771, %v839
      %v845 = vadd.f32 %v776, %v839
      %v846 = vadd.f32 %v781, %v839
      %v847 = vadd.f32 %v786, %v839
      %v848 = vadd.f32 %v791, %v839
      %v849 = vadd.f32 %v796, %v839
      %v850 = vadd.f32 %v801, %v839
      %v851 = vadd.f32 %v806, %v839
      %v852 = vadd.f32 %v811, %v839
      %v853 = vadd.f32 %v816, %v839
      %v854 = vadd.f32 %v821, %v839
      %v855 = vadd.f32 %v826, %v839
      %v856 = vadd.f32 %v831, %v839
      %v857 = vmax.f32 %v841, 0.0
      %v858 = vmax.f32 %v842, 0.0
      %v859 = vmax.f32 %v843, 0.0
      %v860 = vmax.f32 %v844, 0.0
      %v861 = vmax.f32 %v845, 0.0
      %v862 = vmax.f32 %v846, 0.0
      %v863 = vmax.f32 %v847, 0.0
      %v864 = vmax.f32 %v848, 0.0
      %v865 = vmax.f32 %v849, 0.0
      %v866 = vmax.f32 %v850, 0.0
      %v867 = vmax.f32 %v851, 0.0
      %v868 = vmax.f32 %v852, 0.0
      %v869 = vmax.f32 %v853, 0.0
      %v870 = vmax.f32 %v854, 0.0
      %v871 = vmax.f32 %v855, 0.0
      %v872 = vmax.f32 %v856, 0.0
      %873 = vst [vmem:[#allocation15] sm:$0xff] %v857
      %874 = vst [vmem:[#allocation15 + $0x8] sm:$0xff] %v858
      %875 = vst [vmem:[#allocation15 + $0x10] sm:$0xff] %v859
      %876 = vst [vmem:[#allocation15 + $0x18] sm:$0xff] %v860
      %877 = vst [vmem:[#allocation15 + $0x20] sm:$0xff] %v861
      %878 = vst [vmem:[#allocation15 + $0x28] sm:$0xff] %v862
      %879 = vst [vmem:[#allocation15 + $0x30] sm:$0xff] %v863
      %880 = vst [vmem:[#allocation15 + $0x38] sm:$0xff] %v864
      %881 = vst [vmem:[#allocation15 + $0x40] sm:$0xff] %v865
      %882 = vst [vmem:[#allocation15 + $0x48] sm:$0xff] %v866
      %883 = vst [vmem:[#allocation15 + $0x50] sm:$0xff] %v867
      %884 = vst [vmem:[#allocation15 + $0x58] sm:$0xff] %v868
      %885 = vst [vmem:[#allocation15 + $0x60] sm:$0xff] %v869
      %886 = vst [vmem:[#allocation15 + $0x68] sm:$0xff] %v870
      %887 = vst [vmem:[#allocation15 + $0x70] sm:$0xff] %v871
      %888 = vst [vmem:[#allocation15 + $0x78] sm:$0xff] %v872
    $region65: #{gnn_forward.2} parent=1 // pred_fallthru
      _
    // Predicated region
    $region66: #{gnn_forward.2} parent=1 // pred_check
      _
    $region67: #{gnn_forward.2} parent=1 // pred_check_branch
      %890 = sbr.rel (0) target = $region69
    $region68: #{gnn_forward.2} parent=1 // pred_region
      %s892 = ssub.s32 2048, 2048
      %893 = vsyncadd [#allocation5], %s892
      %s894 = sshll.u32 [#allocation15], 4
      %s895 = int_to_ptr.vmem [resolvable:$true] %s894
      %900 = dma.vmem_to_hbm [thread:$0]  %s895, 2048, %s7, [#allocation5], 128, 128, 8
    $region69: #{gnn_forward.2} parent=1 // pred_fallthru
      _
    // Predicated region
    $region70: #{gnn_forward.2} parent=1 // pred_check
      _
    $region71: #{gnn_forward.2} parent=1 // pred_check_branch
      %902 = sbr.rel (0) target = $region73
    $region72: #{gnn_forward.2} parent=1 // pred_region
      %903 = dma.done [#allocation5], 2048
    $region73: #{gnn_forward.2} parent=1 // pred_fallthru
      _
    %904 = vsyncpa [#allocation4], 1
    %905 = vsyncpa [#allocation7], 1
    %906 = vsyncpa [#allocation10], 1
    %907 = vsyncpa [#allocation13], 1
    %908 = vsyncpa [#allocation5], 1

</llo_original>
